<compile_context>
chip_gen: v7x
topology: tpu7x:2x2x1
jax: 0.10.0
libtpu: 0.0.40
codegen_flags: <defaults>
</compile_context>

<pallas_src>
import functools

import jax
import jax.numpy as jnp
from jax import lax
from jax.experimental import pallas as pl
from jax.experimental.pallas import tpu as pltpu


def _contrastive_loss_kernel(u_ref, U_ref, y_ref, Y_ref, out_ref,
                             acc_ref, usq_ref,
                             *, m, num_train, tile_n, tiles_per_split):
    p = pl.program_id(0)   # parallel split (both TCs on v7x)
    j = pl.program_id(1)   # streaming axis over the memory bank

    @pl.when(j == 0)
    def _init():
        acc_ref[...] = jnp.zeros_like(acc_ref)
        u0 = u_ref[...]
        usq_ref[...] = jnp.sum(u0 * u0, axis=1, keepdims=True)   # (B, 1)

    u = u_ref[...]        # (B, bit)
    U_t = U_ref[...]      # (tn, bit)
    yb = y_ref[...]       # (B, C)
    Y_t = Y_ref[...]      # (tn, C)

    contract = (((1,), (1,)), ((), ()))   # contract last axis of both (no .T)

    # ||u - U||^2 = ||u||^2 + ||U||^2 - 2 u.U^T   -- all MXU, result (B, tn)
    cross = lax.dot_general(u, U_t, contract,
                            preferred_element_type=jnp.float32)
    ones_b = jnp.ones(u.shape, dtype=jnp.float32)
    Usq = lax.dot_general(ones_b, U_t * U_t, contract,
                          preferred_element_type=jnp.float32)
    dist = usq_ref[...] + Usq - 2.0 * cross                      # (B, tn)

    # sim[i, j] = 1.0 iff labels share no class (robust threshold, not ==0.0)
    inner = lax.dot_general(yb, Y_t, contract,
                            preferred_element_type=jnp.float32)  # (B, tn)
    sim = (inner < 0.5).astype(jnp.float32)

    loss_tile = (1.0 - sim) * 0.5 * dist + sim * 0.5 * jnp.maximum(m - dist, 0.0)

    # Mask bank rows that fall past num_train (ragged tail / overflow tiles).
    base = (p * tiles_per_split + j) * tile_n
    col = base + lax.broadcasted_iota(jnp.int32, (1, tile_n), 1)
    loss_tile = jnp.where(col < num_train, loss_tile, 0.0)

    # Elementwise accumulate into resident VMEM vector scratch (VPU only).
    acc_ref[...] += loss_tile

    @pl.when(j == pl.num_programs(1) - 1)
    def _finalize():
        total = jnp.sum(acc_ref[...])
        out_ref[...] = jnp.full(out_ref.shape, total, dtype=jnp.float32)


def contrastive_loss(u, y, ind, U, Y, *, bit, alpha, tile_n=512, n_split=2):
    """Forward pass of ContrasiveLoss.

    Returns (scalar loss, updated U buffer, updated Y buffer).
    """
    u = u.astype(jnp.float32)
    y = y.astype(jnp.float32)

    # Buffer scatter-update (self.U[ind] = u.data ; self.Y[ind] = y.float())
    U = U.at[ind].set(u)
    Y = Y.at[ind].set(y)

    m = 2.0 * bit
    num_train = U.shape[0]
    batch, n_class = y.shape

    if num_train <= tile_n:
        tile_n_eff = num_train                    # single (full) bank tile
    else:
        assert tile_n % 128 == 0, "tile_n must be a multiple of 128"
        tile_n_eff = tile_n

    total_tiles = -(-num_train // tile_n_eff)
    tiles_per_split = -(-total_tiles // n_split)

    def bank_map(p_, j_):
        # Clamp overflow tiles in-bounds; their contribution is masked to 0.
        return (jnp.minimum(p_ * tiles_per_split + j_, total_tiles - 1), 0)

    kernel = functools.partial(
        _contrastive_loss_kernel,
        m=m, num_train=num_train, tile_n=tile_n_eff,
        tiles_per_split=tiles_per_split)

    flops = 2 * batch * num_train * (2 * bit + n_class)
    bytes_accessed = 4 * (num_train * (bit + n_class)
                          + batch * (bit + n_class)
                          + n_split * 8 * 128)

    out = pl.pallas_call(
        kernel,
        out_shape=jax.ShapeDtypeStruct((n_split, 8, 128), jnp.float32),
        grid_spec=pltpu.PrefetchScalarGridSpec(
            num_scalar_prefetch=0,
            grid=(n_split, tiles_per_split),
            in_specs=[
                pl.BlockSpec((batch, bit), lambda p_, j_: (0, 0)),        # u
                pl.BlockSpec((tile_n_eff, bit), bank_map),                # U tile
                pl.BlockSpec((batch, n_class), lambda p_, j_: (0, 0)),    # y
                pl.BlockSpec((tile_n_eff, n_class), bank_map),            # Y tile
            ],
            out_specs=pl.BlockSpec((1, 8, 128), lambda p_, j_: (p_, 0, 0)),
            scratch_shapes=[
                pltpu.VMEM((batch, tile_n_eff), jnp.float32),   # loss accumulator
                pltpu.VMEM((batch, 1), jnp.float32),            # ||u||^2
            ],
        ),
        compiler_params=pltpu.CompilerParams(
            dimension_semantics=("parallel", "arbitrary")),
        cost_estimate=pl.CostEstimate(
            flops=flops, transcendentals=0, bytes_accessed=bytes_accessed),
    )(u, U, y, Y)

    partials = out[:, 0, 0]                                   # (n_split,)
    loss1 = jnp.sum(partials) / jnp.float32(batch * num_train)
    loss2 = jnp.float32(alpha) * jnp.mean(jnp.abs(1.0 - jnp.abs(u)))
    return loss1 + loss2, U, Y


def _reference(u, y, ind, U, Y, *, bit, alpha):
    """Pure-JAX reference matching the PyTorch module."""
    u = u.astype(jnp.float32)
    y = y.astype(jnp.float32)
    U = U.at[ind].set(u)
    Y = Y.at[ind].set(y)
    m = 2.0 * bit
    dist = jnp.sum((u[:, None, :] - U[None, :, :]) ** 2, axis=2)
    sim = (y @ Y.T == 0).astype(jnp.float32)
    loss = (1.0 - sim) * 0.5 * dist + sim * 0.5 * jnp.maximum(m - dist, 0.0)
    return loss.mean() + alpha * jnp.mean(jnp.abs(1.0 - jnp.abs(u)))


if __name__ == "__main__":
    # Small shapes consistent with the module's forward.
    batch = 2
    bit = 8
    num_train = 32
    n_class = 4
    alpha = 0.1

    key = jax.random.PRNGKey(0)
    k_u, k_lbl = jax.random.split(key, 2)

    # Batch hash codes and one-hot labels.
    u = jax.random.normal(k_u, (batch, bit), dtype=jnp.float32)
    labels = jax.random.randint(k_lbl, (batch,), 0, n_class)
    y = jax.nn.one_hot(labels, n_class, dtype=jnp.float32)
    ind = jnp.array([3, 17], dtype=jnp.int32)

    # Buffers initialized exactly as in __init__ (zeros).
    U0 = jnp.zeros((num_train, bit), dtype=jnp.float32)
    Y0 = jnp.zeros((num_train, n_class), dtype=jnp.float32)

    loss, U_new, Y_new = contrastive_loss(
        u, y, ind, U0, Y0, bit=bit, alpha=alpha, tile_n=512, n_split=2)
    jax.block_until_ready(loss)
    jax.block_until_ready(U_new)
    jax.block_until_ready(Y_new)

    assert loss.shape == ()
    assert bool(jnp.isfinite(loss))

    ref = _reference(u, y, ind, U0, Y0, bit=bit, alpha=alpha)
    jax.block_until_ready(ref)
    assert bool(jnp.allclose(loss, ref, rtol=1e-2, atol=1e-2)), (loss, ref)

    print("KERNEL_OK")
</pallas_src>

<mosaic_0001>
module attributes {stable_mosaic.version = 11 : i64} {
  func.func @_contrastive_loss_kernel(%arg0: i32, %arg1: i32, %arg2: memref<2x8xf32, #tpu.memory_space<vmem>>, %arg3: memref<32x8xf32, #tpu.memory_space<vmem>>, %arg4: memref<2x4xf32, #tpu.memory_space<vmem>>, %arg5: memref<32x4xf32, #tpu.memory_space<vmem>>, %arg6: memref<1x8x128xf32, #tpu.memory_space<vmem>>, %arg7: memref<2x32xf32, #tpu.memory_space<vmem>>, %arg8: memref<2x1xf32, #tpu.memory_space<vmem>>) attributes {dimension_semantics = [#tpu.dimension_semantics<parallel>, #tpu.dimension_semantics<arbitrary>], iteration_bounds = array<i64: 2, 1>, scalar_prefetch = 0 : i64, scratch_operands = 2 : i64, tpu.core_type = #tpu.core_type<tc>, window_params = [{pipeline_mode = #tpu.pipeline_mode<synchronous>, transform_indices = @transform_0, window_bounds = array<i64: 2, 8>}, {transform_indices = @transform_1, window_bounds = array<i64: 32, 8>}, {pipeline_mode = #tpu.pipeline_mode<synchronous>, transform_indices = @transform_2, window_bounds = array<i64: 2, 4>}, {transform_indices = @transform_3, window_bounds = array<i64: 32, 4>}, {transform_indices = @transform_4, window_bounds = array<i64: 1, 8, 128>}]} {
    %c0_i32 = arith.constant 0 : i32
    %0 = arith.cmpi eq, %arg1, %c0_i32 : i32
    %1 = arith.extui %0 : i1 to i32
    %c0_i32_0 = arith.constant 0 : i32
    %2 = arith.cmpi ne, %1, %c0_i32_0 : i32
    scf.if %2 {
      %cst_28 = arith.constant 0.000000e+00 : f32
      %53 = vector.broadcast %cst_28 : f32 to vector<2x32xf32>
      %c0_29 = arith.constant 0 : index
      %c0_30 = arith.constant 0 : index
      %54 = vector.load %arg7[%c0_29, %c0_30] : memref<2x32xf32, #tpu.memory_space<vmem>>, vector<2x32xf32>
      tpu.vector_store %arg7[%c0_29, %c0_30], %53 {strides = array<i32>} : memref<2x32xf32, #tpu.memory_space<vmem>>, vector<2x32xf32>,
      %c0_31 = arith.constant 0 : index
      %c0_32 = arith.constant 0 : index
      %55 = vector.load %arg2[%c0_31, %c0_32] : memref<2x8xf32, #tpu.memory_space<vmem>>, vector<2x8xf32>
      %56 = arith.mulf %55, %55 : vector<2x8xf32>
      %cst_33 = arith.constant dense<0.000000e+00> : vector<2xf32>
      %57 = vector.multi_reduction <add>, %56, %cst_33 [1] : vector<2x8xf32> to vector<2xf32>
      %58 = vector.shape_cast %57 : vector<2xf32> to vector<2x1xf32>
      %c0_34 = arith.constant 0 : index
      %c0_35 = arith.constant 0 : index
      %59 = vector.load %arg8[%c0_34, %c0_35] : memref<2x1xf32, #tpu.memory_space<vmem>>, vector<2x1xf32>
      tpu.vector_store %arg8[%c0_34, %c0_35], %58 {strides = array<i32>} : memref<2x1xf32, #tpu.memory_space<vmem>>, vector<2x1xf32>,
    } else {
    }
    %c0 = arith.constant 0 : index
    %c0_1 = arith.constant 0 : index
    %3 = vector.load %arg2[%c0, %c0_1] : memref<2x8xf32, #tpu.memory_space<vmem>>, vector<2x8xf32>
    %c0_2 = arith.constant 0 : index
    %c0_3 = arith.constant 0 : index
    %4 = vector.load %arg3[%c0_2, %c0_3] : memref<32x8xf32, #tpu.memory_space<vmem>>, vector<32x8xf32>
    %c0_4 = arith.constant 0 : index
    %c0_5 = arith.constant 0 : index
    %5 = vector.load %arg4[%c0_4, %c0_5] : memref<2x4xf32, #tpu.memory_space<vmem>>, vector<2x4xf32>
    %c0_6 = arith.constant 0 : index
    %c0_7 = arith.constant 0 : index
    %6 = vector.load %arg5[%c0_6, %c0_7] : memref<32x4xf32, #tpu.memory_space<vmem>>, vector<32x4xf32>
    %cst = arith.constant dense<0.000000e+00> : vector<2x32xf32>
    %7 = tpu.matmul %3, %4, %cst {dimension_numbers = #tpu.dot_dimension_numbers<[1], [1], [0], [0], [0, 0, 1, 0], [], []>} : vector<2x8xf32>, vector<32x8xf32>, vector<2x32xf32> -> vector<2x32xf32>
    %cst_8 = arith.constant 1.000000e+00 : f32
    %8 = vector.broadcast %cst_8 : f32 to vector<2x8xf32>
    %9 = arith.mulf %4, %4 : vector<32x8xf32>
    %cst_9 = arith.constant dense<0.000000e+00> : vector<2x32xf32>
    %10 = tpu.matmul %8, %9, %cst_9 {dimension_numbers = #tpu.dot_dimension_numbers<[1], [1], [0], [0], [0, 0, 1, 0], [], []>} : vector<2x8xf32>, vector<32x8xf32>, vector<2x32xf32> -> vector<2x32xf32>
    %c0_10 = arith.constant 0 : index
    %c0_11 = arith.constant 0 : index
    %11 = vector.load %arg8[%c0_10, %c0_11] : memref<2x1xf32, #tpu.memory_space<vmem>>, vector<2x1xf32>
    %12 = vector.broadcast %11 : vector<2x1xf32> to vector<2x32xf32>
    %13 = arith.addf %12, %10 : vector<2x32xf32>
    %cst_12 = arith.constant 2.000000e+00 : f32
    %14 = vector.broadcast %cst_12 : f32 to vector<2x32xf32>
    %15 = arith.mulf %14, %7 : vector<2x32xf32>
    %16 = arith.subf %13, %15 : vector<2x32xf32>
    %cst_13 = arith.constant dense<0.000000e+00> : vector<2x32xf32>
    %17 = tpu.matmul %5, %6, %cst_13 {dimension_numbers = #tpu.dot_dimension_numbers<[1], [1], [0], [0], [0, 0, 1, 0], [], []>} : vector<2x4xf32>, vector<32x4xf32>, vector<2x32xf32> -> vector<2x32xf32>
    %cst_14 = arith.constant 5.000000e-01 : f32
    %18 = vector.broadcast %cst_14 : f32 to vector<2x32xf32>
    %19 = arith.cmpf olt, %17, %18 : vector<2x32xf32>
    %20 = arith.extui %19 : vector<2x32xi1> to vector<2x32xi32>
    %21 = arith.sitofp %20 : vector<2x32xi32> to vector<2x32xf32>
    %cst_15 = arith.constant 1.000000e+00 : f32
    %22 = vector.broadcast %cst_15 : f32 to vector<2x32xf32>
    %23 = arith.subf %22, %21 : vector<2x32xf32>
    %cst_16 = arith.constant 5.000000e-01 : f32
    %24 = vector.broadcast %cst_16 : f32 to vector<2x32xf32>
    %25 = arith.mulf %23, %24 : vector<2x32xf32>
    %26 = arith.mulf %25, %16 : vector<2x32xf32>
    %cst_17 = arith.constant 5.000000e-01 : f32
    %27 = vector.broadcast %cst_17 : f32 to vector<2x32xf32>
    %28 = arith.mulf %21, %27 : vector<2x32xf32>
    %cst_18 = arith.constant 1.600000e+01 : f32
    %29 = vector.broadcast %cst_18 : f32 to vector<2x32xf32>
    %30 = arith.subf %29, %16 : vector<2x32xf32>
    %cst_19 = arith.constant 0.000000e+00 : f32
    %31 = vector.broadcast %cst_19 : f32 to vector<2x32xf32>
    %32 = arith.maximumf %30, %31 : vector<2x32xf32>
    %33 = arith.mulf %28, %32 : vector<2x32xf32>
    %34 = arith.addf %26, %33 : vector<2x32xf32>
    %c1_i32 = arith.constant 1 : i32
    %35 = arith.muli %arg0, %c1_i32 : i32
    %36 = arith.addi %35, %arg1 : i32
    %c32_i32 = arith.constant 32 : i32
    %37 = arith.muli %36, %c32_i32 : i32
    %38 = tpu.iota {dimensions = array<i32: 1>} : vector<1x32xi32>
    %39 = vector.broadcast %37 : i32 to vector<1x32xi32>
    %40 = arith.addi %39, %38 : vector<1x32xi32>
    %c32_i32_20 = arith.constant 32 : i32
    %41 = vector.broadcast %c32_i32_20 : i32 to vector<1x32xi32>
    %42 = arith.cmpi slt, %40, %41 : vector<1x32xi32>
    %cst_21 = arith.constant 0.000000e+00 : f32
    %43 = vector.shape_cast %42 : vector<1x32xi1> to vector<1x32xi1>
    %44 = vector.broadcast %43 : vector<1x32xi1> to vector<2x32xi1>
    %45 = vector.broadcast %cst_21 : f32 to vector<2x32xf32>
    %46 = arith.select %44, %34, %45 : vector<2x32xi1>, vector<2x32xf32>
    %c0_22 = arith.constant 0 : index
    %c0_23 = arith.constant 0 : index
    %47 = vector.load %arg7[%c0_22, %c0_23] : memref<2x32xf32, #tpu.memory_space<vmem>>, vector<2x32xf32>
    %48 = arith.addf %47, %46 : vector<2x32xf32>
    %c0_24 = arith.constant 0 : index
    %c0_25 = arith.constant 0 : index
    %49 = vector.load %arg7[%c0_24, %c0_25] : memref<2x32xf32, #tpu.memory_space<vmem>>, vector<2x32xf32>
    tpu.vector_store %arg7[%c0_24, %c0_25], %48 {strides = array<i32>} : memref<2x32xf32, #tpu.memory_space<vmem>>, vector<2x32xf32>,
    %c0_i32_26 = arith.constant 0 : i32
    %50 = arith.cmpi eq, %arg1, %c0_i32_26 : i32
    %51 = arith.extui %50 : i1 to i32
    %c0_i32_27 = arith.constant 0 : i32
    %52 = arith.cmpi ne, %51, %c0_i32_27 : i32
    scf.if %52 {
      %c0_28 = arith.constant 0 : index
      %c0_29 = arith.constant 0 : index
      %53 = vector.load %arg7[%c0_28, %c0_29] : memref<2x32xf32, #tpu.memory_space<vmem>>, vector<2x32xf32>
      %54 = vector.shape_cast %53 : vector<2x32xf32> to vector<1x2x32xf32>
      %cst_30 = arith.constant dense<0.000000e+00> : vector<1xf32>
      %55 = vector.multi_reduction <add>, %54, %cst_30 [1, 2] : vector<1x2x32xf32> to vector<1xf32>
      %56 = vector.shape_cast %55 : vector<1xf32> to vector<1x1x1xf32>
      %57 = vector.extract %56[0, 0, 0] : f32 from vector<1x1x1xf32>
      %58 = vector.broadcast %57 : f32 to vector<1x8x128xf32>
      %c0_31 = arith.constant 0 : index
      %c0_32 = arith.constant 0 : index
      %c0_33 = arith.constant 0 : index
      %59 = vector.load %arg6[%c0_31, %c0_32, %c0_33] : memref<1x8x128xf32, #tpu.memory_space<vmem>>, vector<1x8x128xf32>
      tpu.vector_store %arg6[%c0_31, %c0_32, %c0_33], %58 {strides = array<i32>} : memref<1x8x128xf32, #tpu.memory_space<vmem>>, vector<1x8x128xf32>,
    } else {
    }
    return
  }
  func.func @transform_0(%arg0: i32, %arg1: i32) -> (i32, i32) {
    %c0_i32 = arith.constant 0 : i32
    %c0_i32_0 = arith.constant 0 : i32
    %c0_i32_1 = arith.constant 0 : i32
    return %c0_i32, %c0_i32_0 : i32, i32
  }
  func.func @transform_1(%arg0: i32, %arg1: i32) -> (i32, i32) {
    %c1_i32 = arith.constant 1 : i32
    %0 = arith.muli %arg0, %c1_i32 : i32
    %1 = arith.addi %0, %arg1 : i32
    %c0_i32 = arith.constant 0 : i32
    %2 = arith.minsi %1, %c0_i32 : i32
    %c0_i32_0 = arith.constant 0 : i32
    %c0_i32_1 = arith.constant 0 : i32
    return %2, %c0_i32_0 : i32, i32
  }
  func.func @transform_2(%arg0: i32, %arg1: i32) -> (i32, i32) {
    %c0_i32 = arith.constant 0 : i32
    %c0_i32_0 = arith.constant 0 : i32
    %c0_i32_1 = arith.constant 0 : i32
    return %c0_i32, %c0_i32_0 : i32, i32
  }
  func.func @transform_3(%arg0: i32, %arg1: i32) -> (i32, i32) {
    %c1_i32 = arith.constant 1 : i32
    %0 = arith.muli %arg0, %c1_i32 : i32
    %1 = arith.addi %0, %arg1 : i32
    %c0_i32 = arith.constant 0 : i32
    %2 = arith.minsi %1, %c0_i32 : i32
    %c0_i32_0 = arith.constant 0 : i32
    %c0_i32_1 = arith.constant 0 : i32
    return %2, %c0_i32_0 : i32, i32
  }
  func.func @transform_4(%arg0: i32, %arg1: i32) -> (i32, i32, i32) {
    %c0_i32 = arith.constant 0 : i32
    %c0_i32_0 = arith.constant 0 : i32
    %c0_i32_1 = arith.constant 0 : i32
    return %arg0, %c0_i32, %c0_i32_0 : i32, i32, i32
  }
}

</mosaic_0001>

<llo_original>
// kernel: tpu_custom_call.1
$region0: #{tpu_custom_call.1}
  #allocation0 [shape = 'u32[]', space=smem, size = 0x4, offset = 0x4, fixed_abs, tag = 'smem constant byte address 0x4 - core index']
  #allocation1 [shape = 'u32[144,128]{1,0:T(1,128)}', space=vmem, size = 0x12000, scoped, tag = 'internal scratch']
  #allocation2 [shape = 'f32[2,32]{1,0:T(2,128)}', space=vmem, size = 0x400, scoped, tag = 'scratch operand']
  #allocation3 [shape = 'f32[2,1]{1,0:T(2,128)}', space=vmem, size = 0x400, scoped, tag = 'scratch operand']
  %s0 = inlined_call_operand.vmem [shape: f32[2,8], index: 0, kind: input, shape index: {}]
  %s1 = inlined_call_operand.vmem [shape: f32[32,8], index: 1, kind: input, shape index: {}]
  %s2 = inlined_call_operand.vmem [shape: f32[2,4], index: 2, kind: input, shape index: {}]
  %s3 = inlined_call_operand.vmem [shape: f32[32,4], index: 3, kind: input, shape index: {}]
  %s4 = inlined_call_operand.hbm [shape: f32[2,8,128], index: 4, kind: output, shape index: {}]
  %s5 = sld [smem:[#allocation0]]
  $region57: #{tpu_custom_call.1} parent=0
    _
  %s7 = ssub.s32 1, %s5
  %s8 = scalar_select 0, %s7, %s5
  $region1: #{tpu_custom_call.1} parent=0
    #allocation4 [shape = 'u8[8192]{0}', space=vmem, size = 0x2000, scoped, tag = 'output window, operand 0']
    #allocation5 [shape = 's32[2]{0}', space=sflag, size = 0x8, scoped, tag = 'scoped memory for tpu_custom_call.1']
    %9 = vsyncpa [#allocation5], 0
    %s10 = scalar_lea.sflag [#allocation5], 1
    %11 = vsyncpa %s10, 0
    loop: start=0, step=1, limit=4
    $region2: #{tpu_custom_call.1} parent=1 // loop_pre_header
      _
    $region3: #{tpu_custom_call.1} parent=1 // loop_header
      %s13 = sphi 0, %s17
      %p14 = scmp.ge.s32.totalorder %s13, 4
      %s20 = sphi 0, %s32
      %s21 = sphi 0, %s28
      %s22 = sphi 0, %s20
      %s23 = sphi 0, %s21
      %s24 = sphi 0, %s22
      %s25 = sphi 0, %s23
      %s33 = sphi 0, %s33
      %s35 = sphi 0, %s33
      %s36 = sphi 0, %s35
      %s50 = sphi 0, %s36
      %s62 = sphi 0, %s64
      %s65 = sphi 0, %s62
      %s66 = sphi 0, %s65
      %s82 = sphi 0, %s66
      %s86 = sphi 0, %s86
      %s88 = sphi 0, %s86
      %s89 = sphi 0, %s88
      %s103 = sphi 0, %s89
      %s115 = sphi 0, %s117
      %s118 = sphi 0, %s115
      %s119 = sphi 0, %s118
      %s135 = sphi 0, %s119
      %s141 = sphi 0, %s143
      %s144 = sphi 0, %s141
      %s145 = sphi 0, %s144
      %s161 = sphi 0, %s145
    $region4: #{tpu_custom_call.1} parent=1 // loop_header_branch
      %16 = sbr.rel (%p14) target = $region8
    $region5: #{tpu_custom_call.1} parent=1 // loop_body
      %s18 = ssub.s32 %s13, 1
      %s19 = ssub.s32 %s13, 2
      %s26 = sadd.s32 1, %s21
      %p27 = scmp.ge.s32.totalorder %s26, 1
      %s28 = scalar_select %p27, 0, %s26
      %s29 = sadd.s32 1, %s20
      %s30 = scalar_select %p27, %s29, %s20
      %p31 = scmp.ge.s32.totalorder %s30, 2
      %s32 = scalar_select %p31, 0, %s30
      %s34 = sadd.s32 %s33, 1
      %p37 = scmp.eq.s32.totalorder %s13, 1
      %p38 = scmp.ne.s32.totalorder %s33, %s35
      %p39 = scmp.eq.s32.totalorder %s13, 0
      %p40 = por %p38, %p39
      %p41 = scmp.ne.s32.totalorder %s33, %s35
      %p42 = scmp.eq.s32.totalorder %s18, 1
      %p43 = por %p41, %p42
      %p44 = scmp.ne.s32.totalorder %s35, %s36
      %p45 = scmp.eq.s32.totalorder %s18, 0
      %p46 = por %p44, %p45
      %p47 = scmp.ne.s32.totalorder %s35, %s36
      %p48 = scmp.eq.s32.totalorder %s19, 1
      %p49 = por %p47, %p48
      %p51 = scmp.ne.s32.totalorder %s36, %s50
      %p52 = scmp.eq.s32.totalorder %s19, 0
      %p53 = por %p51, %p52
      %s54 = sadd.s32 %s20, %s21
      %p55 = scmp.lt.s32.totalorder %s54, 0
      %s56 = scalar_select %p55, %s54, 0
      %s57 = sadd.s32 %s32, %s28
      %p58 = scmp.lt.s32.totalorder %s57, 0
      %s59 = scalar_select %p58, %s57, 0
      %s60 = ssub.s32 %s56, %s59
      %p61 = scmp.eq.s32.totalorder %s60, 0
      %s63 = sadd.s32 %s62, 1
      %s64 = scalar_select %p61, %s62, %s63
      %p67 = pneg %p61
      %p68 = scmp.eq.s32.totalorder %s13, 1
      %p69 = por %p67, %p68
      %p70 = scmp.ne.s32.totalorder %s62, %s65
      %p71 = scmp.eq.s32.totalorder %s13, 0
      %p72 = por %p70, %p71
      %p73 = scmp.ne.s32.totalorder %s62, %s65
      %p74 = scmp.eq.s32.totalorder %s18, 1
      %p75 = por %p73, %p74
      %p76 = scmp.ne.s32.totalorder %s65, %s66
      %p77 = scmp.eq.s32.totalorder %s18, 0
      %p78 = por %p76, %p77
      %p79 = scmp.ne.s32.totalorder %s65, %s66
      %p80 = scmp.eq.s32.totalorder %s19, 1
      %p81 = por %p79, %p80
      %p83 = scmp.ne.s32.totalorder %s66, %s82
      %p84 = scmp.eq.s32.totalorder %s19, 0
      %p85 = por %p83, %p84
      %s87 = sadd.s32 %s86, 1
      %p90 = scmp.eq.s32.totalorder %s13, 1
      %p91 = scmp.ne.s32.totalorder %s86, %s88
      %p92 = scmp.eq.s32.totalorder %s13, 0
      %p93 = por %p91, %p92
      %p94 = scmp.ne.s32.totalorder %s86, %s88
      %p95 = scmp.eq.s32.totalorder %s18, 1
      %p96 = por %p94, %p95
      %p97 = scmp.ne.s32.totalorder %s88, %s89
      %p98 = scmp.eq.s32.totalorder %s18, 0
      %p99 = por %p97, %p98
      %p100 = scmp.ne.s32.totalorder %s88, %s89
      %p101 = scmp.eq.s32.totalorder %s19, 1
      %p102 = por %p100, %p101
      %p104 = scmp.ne.s32.totalorder %s89, %s103
      %p105 = scmp.eq.s32.totalorder %s19, 0
      %p106 = por %p104, %p105
      %s107 = sadd.s32 %s20, %s21
      %p108 = scmp.lt.s32.totalorder %s107, 0
      %s109 = scalar_select %p108, %s107, 0
      %s110 = sadd.s32 %s32, %s28
      %p111 = scmp.lt.s32.totalorder %s110, 0
      %s112 = scalar_select %p111, %s110, 0
      %s113 = ssub.s32 %s109, %s112
      %p114 = scmp.eq.s32.totalorder %s113, 0
      %s116 = sadd.s32 %s115, 1
      %s117 = scalar_select %p114, %s115, %s116
      %p120 = pneg %p114
      %p121 = scmp.eq.s32.totalorder %s13, 1
      %p122 = por %p120, %p121
      %p123 = scmp.ne.s32.totalorder %s115, %s118
      %p124 = scmp.eq.s32.totalorder %s13, 0
      %p125 = por %p123, %p124
      %p126 = scmp.ne.s32.totalorder %s115, %s118
      %p127 = scmp.eq.s32.totalorder %s18, 1
      %p128 = por %p126, %p127
      %p129 = scmp.ne.s32.totalorder %s118, %s119
      %p130 = scmp.eq.s32.totalorder %s18, 0
      %p131 = por %p129, %p130
      %p132 = scmp.ne.s32.totalorder %s118, %s119
      %p133 = scmp.eq.s32.totalorder %s19, 1
      %p134 = por %p132, %p133
      %p136 = scmp.ne.s32.totalorder %s119, %s135
      %p137 = scmp.eq.s32.totalorder %s19, 0
      %p138 = por %p136, %p137
      %s139 = ssub.s32 %s20, %s32
      %p140 = scmp.eq.s32.totalorder %s139, 0
      %s142 = sadd.s32 %s141, 1
      %s143 = scalar_select %p140, %s141, %s142
      %p146 = pneg %p140
      %p147 = scmp.eq.s32.totalorder %s13, 1
      %p148 = por %p146, %p147
      %p149 = scmp.ne.s32.totalorder %s141, %s144
      %p150 = scmp.eq.s32.totalorder %s13, 0
      %p151 = por %p149, %p150
      %p152 = scmp.ne.s32.totalorder %s141, %s144
      %p153 = scmp.eq.s32.totalorder %s18, 1
      %p154 = por %p152, %p153
      %p155 = scmp.ne.s32.totalorder %s144, %s145
      %p156 = scmp.eq.s32.totalorder %s18, 0
      %p157 = por %p155, %p156
      %p158 = scmp.ne.s32.totalorder %s144, %s145
      %p159 = scmp.eq.s32.totalorder %s19, 1
      %p160 = por %p158, %p159
      %p162 = scmp.ne.s32.totalorder %s145, %s161
      %p163 = scmp.eq.s32.totalorder %s19, 0
      %p164 = por %p162, %p163
      %p165 = scmp.le.s32.totalorder 1, %s13
      %p166 = scmp.lt.s32.totalorder %s13, 3
      %p167 = pnand %p165, %p166
      %p168 = pneg %p167
      // Predicated region
      $region9: #{tpu_custom_call.1} parent=5 // pred_check
        _
      $region10: #{tpu_custom_call.1} parent=5 // pred_check_branch
        %170 = sbr.rel (%p167) target = $region12
      $region11: #{tpu_custom_call.1} parent=5 // pred_region
        %s171 = ssub.s32 %s13, 1
        // Predicated region
        $region13: #{tpu_custom_call.1} parent=11 // pred_check
          %p172 = pneg %p46
        $region14: #{tpu_custom_call.1} parent=11 // pred_check_branch
          %174 = sbr.rel (%p172) target = $region16
        $region15: #{tpu_custom_call.1} parent=11 // pred_region
          _
        $region16: #{tpu_custom_call.1} parent=11 // pred_fallthru
          _
        // Predicated region
        $region17: #{tpu_custom_call.1} parent=11 // pred_check
          %p175 = pneg %p99
        $region18: #{tpu_custom_call.1} parent=11 // pred_check_branch
          %177 = sbr.rel (%p175) target = $region20
        $region19: #{tpu_custom_call.1} parent=11 // pred_region
          _
        $region20: #{tpu_custom_call.1} parent=11 // pred_fallthru
          _
      $region12: #{tpu_custom_call.1} parent=5 // pred_fallthru
        _
      %p178 = scmp.lt.s32.totalorder %s13, 2
      // Predicated region
      $region21: #{tpu_custom_call.1} parent=5 // pred_check
        %p179 = pneg %p178
      $region22: #{tpu_custom_call.1} parent=5 // pred_check_branch
        %181 = sbr.rel (%p179) target = $region24
      $region23: #{tpu_custom_call.1} parent=5 // pred_region
        // Predicated region
        $region25: #{tpu_custom_call.1} parent=23 // pred_check
          %p182 = pneg %p72
        $region26: #{tpu_custom_call.1} parent=23 // pred_check_branch
          %184 = sbr.rel (%p182) target = $region28
        $region27: #{tpu_custom_call.1} parent=23 // pred_region
          %s185 = sadd.s32 %s20, %s21
          %p186 = scmp.lt.s32.totalorder %s185, 0
          %s187 = scalar_select %p186, %s185, 0
          %s188 = smul.u32 4, %s187
          %p189 = scmp.lt.s32.totalorder %s188, 3
          %s190 = scalar_select %p189, %s188, 3
          %s191 = smul.addr %s190, 8
          %s192 = scalar_lea.vmem %s1, %s191
          %s193 = sadd.s32 %s20, %s21
          %p194 = scmp.lt.s32.totalorder %s193, 0
          %s195 = scalar_select %p194, %s193, 0
          %s196 = smul.u32 4, %s195
        $region28: #{tpu_custom_call.1} parent=23 // pred_fallthru
          _
        // Predicated region
        $region29: #{tpu_custom_call.1} parent=23 // pred_check
          %p197 = pneg %p125
        $region30: #{tpu_custom_call.1} parent=23 // pred_check_branch
          %199 = sbr.rel (%p197) target = $region32
        $region31: #{tpu_custom_call.1} parent=23 // pred_region
          %s200 = sadd.s32 %s20, %s21
          %p201 = scmp.lt.s32.totalorder %s200, 0
          %s202 = scalar_select %p201, %s200, 0
          %s203 = smul.u32 4, %s202
          %p204 = scmp.lt.s32.totalorder %s203, 3
          %s205 = scalar_select %p204, %s203, 3
          %s206 = smul.addr %s205, 8
          %s207 = scalar_lea.vmem %s3, %s206
          %s208 = sadd.s32 %s20, %s21
          %p209 = scmp.lt.s32.totalorder %s208, 0
          %s210 = scalar_select %p209, %s208, 0
          %s211 = smul.u32 4, %s210
        $region32: #{tpu_custom_call.1} parent=23 // pred_fallthru
          _
      $region24: #{tpu_custom_call.1} parent=5 // pred_fallthru
        _
      %p212 = scmp.le.s32.totalorder 1, %s13
      %p213 = scmp.lt.s32.totalorder %s13, 3
      %p214 = pnand %p212, %p213
      %p215 = pneg %p214
      // Predicated region
      $region33: #{tpu_custom_call.1} parent=5 // pred_check
        _
      $region34: #{tpu_custom_call.1} parent=5 // pred_check_branch
        %217 = sbr.rel (%p214) target = $region36
      $region35: #{tpu_custom_call.1} parent=5 // pred_region
        %s218 = ssub.s32 %s13, 1
        %p219 = pneg %p46
        %p220 = pneg %p43
        %s221 = sadd.s32 %s22, %s23
        %p222 = scmp.lt.s32.totalorder %s221, 0
        %s223 = scalar_select %p222, %s221, 0
        %s224 = smul.u32 4, %s223
        %p225 = scmp.lt.s32.totalorder %s224, 3
        %s226 = scalar_select %p225, %s224, 3
        %s227 = smul.addr %s226, 8
        %s228 = scalar_lea.vmem %s1, %s227
        %p229 = pneg %p78
        %p230 = pneg %p75
        %p231 = pneg %p99
        %p232 = pneg %p96
        %s233 = sadd.s32 %s22, %s23
        %p234 = scmp.lt.s32.totalorder %s233, 0
        %s235 = scalar_select %p234, %s233, 0
        %s236 = smul.u32 4, %s235
        %p237 = scmp.lt.s32.totalorder %s236, 3
        %s238 = scalar_select %p237, %s236, 3
        %s239 = smul.addr %s238, 8
        %s240 = scalar_lea.vmem %s3, %s239
        %p241 = pneg %p131
        %p242 = pneg %p128
        %p243 = pneg %p157
        %p244 = pneg %p154
        %s245 = sand.u32 %s144, 1
        %s246 = scalar_lea.sflag [#allocation5], %s245
        %s247 = sand.u32 %s144, 1
        %s248 = smul.addr %s247, 8
        %s249 = scalar_lea.vmem [#allocation4], %s248
        %s250 = sadd.s32 %s22, %s23
        %p251 = scmp.lt.s32.totalorder %s250, 0
        %s252 = scalar_select %p251, %s250, 0
        %s253 = smul.u32 4, %s252
        %p254 = scmp.lt.s32.totalorder %s253, 3
        %s255 = scalar_select %p254, %s253, 3
        %s256 = smul.addr %s255, 8
        %s257 = scalar_lea.vmem %s1, %s256
        %s258 = sadd.s32 %s22, %s23
        %p259 = scmp.lt.s32.totalorder %s258, 0
        %s260 = scalar_select %p259, %s258, 0
        %s261 = smul.u32 4, %s260
        %s262 = sadd.s32 %s22, %s23
        %p263 = scmp.lt.s32.totalorder %s262, 0
        %s264 = scalar_select %p263, %s262, 0
        %s265 = smul.u32 4, %s264
        %p266 = scmp.lt.s32.totalorder %s265, 3
        %s267 = scalar_select %p266, %s265, 3
        %s268 = smul.addr %s267, 8
        %s269 = scalar_lea.vmem %s3, %s268
        %s270 = sadd.s32 %s22, %s23
        %p271 = scmp.lt.s32.totalorder %s270, 0
        %s272 = scalar_select %p271, %s270, 0
        %s273 = smul.u32 4, %s272
        %p274 = scmp.eq.s32.totalorder %s23, 0
        // Predicated region
        $region37: #{tpu_custom_call.1} parent=35 // pred_check
          %p275 = pneg %p274
        $region38: #{tpu_custom_call.1} parent=35 // pred_check_branch
          %277 = sbr.rel (%p275) target = $region40
        $region39: #{tpu_custom_call.1} parent=35 // pred_region
          %vm278 = vcmask 254976
          %279 = vst.msk [vmem:[#allocation2] sm:$0x3] %vm278, 0.0
          %v280 = vld [vmem:[%s0] sm:$0x3]
          %v281 = vmul.f32 %v280, %v280
          %vm282 = vcmask 58368
          %v283 = vsel %vm282, %v281, 0.0
          %284 = vadd.xlane.f32.xlu0 %v283
          %v285 = vpop.xlane.xlu0 %284
          %vm286 = vcmask 1024
          %287 = vst.msk [vmem:[#allocation3] sm:$0x3] %vm286, %v285
        $region40: #{tpu_custom_call.1} parent=35 // pred_fallthru
          _
        %v288 = vld [vmem:[%s0] sm:$0x3]
        %v289 = vld [vmem:[%s257] sm:$0xff]
        %v290 = vld [vmem:[%s257 + $0x8] sm:$0xff]
        %v291 = vld [vmem:[%s257 + $0x10] sm:$0xff]
        %v292 = vld [vmem:[%s257 + $0x18] sm:$0xff]
        %v293 = vld [vmem:[%s2] sm:$0x3]
        %v294 = vld [vmem:[%s269] sm:$0xff]
        %v295 = vld [vmem:[%s269 + $0x8] sm:$0xff]
        %v296 = vld [vmem:[%s269 + $0x10] sm:$0xff]
        %v297 = vld [vmem:[%s269 + $0x18] sm:$0xff]
        %vm298 = vcmask 64512
        %v300 = vsel %vm298, %v288, 0
        %v303 = vsel %vm298, %v289, 0
        %v306 = vsel %vm298, %v290, 0
        %v309 = vsel %vm298, %v291, 0
        %v312 = vsel %vm298, %v292, 0
        %314 = vmatprep.subr.mxu0 0.0
        %315 = vmatpush1.xpose.msra.mxu0 %v303
        %316 = vmatprep.subr.mxu0 0.0
        %317 = vmatpush1.xpose.msra.mxu0 %v306
        %318 = vmatprep.subr.mxu0 0.0
        %319 = vmatpush1.xpose.msra.mxu0 %v309
        %320 = vmatprep.subr.mxu0 0.0
        %321 = vmatpush1.xpose.msra.mxu0 %v312
        %322 = vmatprep.subr.mxu0 0.0
        %323 = vmatpush1.xpose.msra.mxu0 0.0
        %324 = vmatprep.subr.mxu0 0.0
        %325 = vmatpush1.xpose.msra.mxu0 0.0
        %326 = vmatprep.subr.mxu0 0.0
        %327 = vmatpush1.xpose.msra.mxu0 0.0
        %328 = vmatprep.subr.mxu0 0.0
        %329 = vmatpush1.xpose.msra.mxu0 0.0
        %330 = vmatprep.subr.mxu0 0.0
        %331 = vmatpush1.xpose.msra.mxu0 0.0
        %332 = vmatprep.subr.mxu0 0.0
        %333 = vmatpush1.xpose.msra.mxu0 0.0
        %334 = vmatprep.subr.mxu0 0.0
        %335 = vmatpush1.xpose.msra.mxu0 0.0
        %336 = vmatprep.subr.mxu0 0.0
        %337 = vmatpush1.xpose.msra.mxu0 0.0
        %338 = vmatprep.subr.mxu0 0.0
        %339 = vmatpush1.xpose.msra.mxu0 0.0
        %340 = vmatprep.subr.mxu0 0.0
        %341 = vmatpush1.xpose.msra.mxu0 0.0
        %342 = vmatprep.subr.mxu0 0.0
        %343 = vmatpush1.xpose.msra.mxu0 0.0
        %344 = vmatprep.subr.mxu0 0.0
        %345 = vmatpush1.xpose.msra.mxu0 0.0
        %346 = vmatprep.subr.mxu0 0.0
        %347 = vmatpush1.xpose.msra.mxu0 0.0
        %348 = vmatprep.subr.mxu0 0.0
        %349 = vmatpush1.xpose.msra.mxu0 0.0
        %350 = vmatprep.subr.mxu0 0.0
        %351 = vmatpush1.xpose.msra.mxu0 0.0
        %352 = vmatprep.subr.mxu0 0.0
        %353 = vmatpush1.xpose.msra.mxu0 0.0
        %354 = vmatprep.subr.mxu0 0.0
        %355 = vmatpush1.xpose.msra.mxu0 0.0
        %356 = vmatprep.subr.mxu0 0.0
        %357 = vmatpush1.xpose.msra.mxu0 0.0
        %358 = vmatprep.subr.mxu0 0.0
        %359 = vmatpush1.xpose.msra.mxu0 0.0
        %360 = vmatprep.subr.mxu0 0.0
        %361 = vmatpush1.xpose.msra.mxu0 0.0
        %362 = vmatprep.subr.mxu0 0.0
        %363 = vmatpush1.xpose.msra.mxu0 0.0
        %364 = vmatprep.subr.mxu0 0.0
        %365 = vmatpush1.xpose.msra.mxu0 0.0
        %366 = vmatprep.subr.mxu0 0.0
        %367 = vmatpush1.xpose.msra.mxu0 0.0
        %368 = vmatprep.subr.mxu0 0.0
        %369 = vmatpush1.xpose.msra.mxu0 0.0
        %370 = vmatprep.subr.mxu0 0.0
        %371 = vmatpush1.xpose.msra.mxu0 0.0
        %372 = vmatprep.subr.mxu0 0.0
        %373 = vmatpush1.xpose.msra.mxu0 0.0
        %374 = vmatprep.subr.mxu0 0.0
        %375 = vmatpush1.xpose.msra.mxu0 0.0
        %376 = vmatprep.subr.mxu0 0.0
        %377 = vmatpush1.xpose.msra.mxu0 0.0
        %378 = vmatprep.mubr.f32.mxu0 0.0
        %379 = vmatmul.mubr.f32.gmra.mrb[0].mxu0 %v300
        %v380 = vpop.f32.mrb[0].mxu0
        %v381 = vadd.f32 0.0, %v380
        %v382 = vpop.f32.mrb[0].mxu0
        %383 = vdwg.mxu0
        %v384 = vmul.f32 %v289, %v289
        %v385 = vmul.f32 %v290, %v290
        %v386 = vmul.f32 %v291, %v291
        %v387 = vmul.f32 %v292, %v292
        %v389 = vsel %vm298, 1.0, 0
        %v392 = vsel %vm298, %v384, 0
        %v395 = vsel %vm298, %v385, 0
        %v398 = vsel %vm298, %v386, 0
        %v401 = vsel %vm298, %v387, 0
        %403 = vmatprep.subr.mxu0 0.0
        %404 = vmatpush1.xpose.msra.mxu0 %v392
        %405 = vmatprep.subr.mxu0 0.0
        %406 = vmatpush1.xpose.msra.mxu0 %v395
        %407 = vmatprep.subr.mxu0 0.0
        %408 = vmatpush1.xpose.msra.mxu0 %v398
        %409 = vmatprep.subr.mxu0 0.0
        %410 = vmatpush1.xpose.msra.mxu0 %v401
        %411 = vmatprep.subr.mxu0 0.0
        %412 = vmatpush1.xpose.msra.mxu0 0.0
        %413 = vmatprep.subr.mxu0 0.0
        %414 = vmatpush1.xpose.msra.mxu0 0.0
        %415 = vmatprep.subr.mxu0 0.0
        %416 = vmatpush1.xpose.msra.mxu0 0.0
        %417 = vmatprep.subr.mxu0 0.0
        %418 = vmatpush1.xpose.msra.mxu0 0.0
        %419 = vmatprep.subr.mxu0 0.0
        %420 = vmatpush1.xpose.msra.mxu0 0.0
        %421 = vmatprep.subr.mxu0 0.0
        %422 = vmatpush1.xpose.msra.mxu0 0.0
        %423 = vmatprep.subr.mxu0 0.0
        %424 = vmatpush1.xpose.msra.mxu0 0.0
        %425 = vmatprep.subr.mxu0 0.0
        %426 = vmatpush1.xpose.msra.mxu0 0.0
        %427 = vmatprep.subr.mxu0 0.0
        %428 = vmatpush1.xpose.msra.mxu0 0.0
        %429 = vmatprep.subr.mxu0 0.0
        %430 = vmatpush1.xpose.msra.mxu0 0.0
        %431 = vmatprep.subr.mxu0 0.0
        %432 = vmatpush1.xpose.msra.mxu0 0.0
        %433 = vmatprep.subr.mxu0 0.0
        %434 = vmatpush1.xpose.msra.mxu0 0.0
        %435 = vmatprep.subr.mxu0 0.0
        %436 = vmatpush1.xpose.msra.mxu0 0.0
        %437 = vmatprep.subr.mxu0 0.0
        %438 = vmatpush1.xpose.msra.mxu0 0.0
        %439 = vmatprep.subr.mxu0 0.0
        %440 = vmatpush1.xpose.msra.mxu0 0.0
        %441 = vmatprep.subr.mxu0 0.0
        %442 = vmatpush1.xpose.msra.mxu0 0.0
        %443 = vmatprep.subr.mxu0 0.0
        %444 = vmatpush1.xpose.msra.mxu0 0.0
        %445 = vmatprep.subr.mxu0 0.0
        %446 = vmatpush1.xpose.msra.mxu0 0.0
        %447 = vmatprep.subr.mxu0 0.0
        %448 = vmatpush1.xpose.msra.mxu0 0.0
        %449 = vmatprep.subr.mxu0 0.0
        %450 = vmatpush1.xpose.msra.mxu0 0.0
        %451 = vmatprep.subr.mxu0 0.0
        %452 = vmatpush1.xpose.msra.mxu0 0.0
        %453 = vmatprep.subr.mxu0 0.0
        %454 = vmatpush1.xpose.msra.mxu0 0.0
        %455 = vmatprep.subr.mxu0 0.0
        %456 = vmatpush1.xpose.msra.mxu0 0.0
        %457 = vmatprep.subr.mxu0 0.0
        %458 = vmatpush1.xpose.msra.mxu0 0.0
        %459 = vmatprep.subr.mxu0 0.0
        %460 = vmatpush1.xpose.msra.mxu0 0.0
        %461 = vmatprep.subr.mxu0 0.0
        %462 = vmatpush1.xpose.msra.mxu0 0.0
        %463 = vmatprep.subr.mxu0 0.0
        %464 = vmatpush1.xpose.msra.mxu0 0.0
        %465 = vmatprep.subr.mxu0 0.0
        %466 = vmatpush1.xpose.msra.mxu0 0.0
        %467 = vmatprep.mubr.f32.mxu0 0.0
        %468 = vmatmul.mubr.f32.gmra.mrb[0].mxu0 %v389
        %v469 = vpop.f32.mrb[0].mxu0
        %v470 = vadd.f32 0.0, %v469
        %v471 = vpop.f32.mrb[0].mxu0
        %472 = vdwg.mxu0
        %v473 = vld [vmem:[#allocation3] sm:$0x3]
        %475 = vset.pattern.permute.xlu0 0
        %476 = vperm.xlu0 %475, %v473
        %v477 = vpop.permute.xlu0 %476
        %v479 = vadd.f32 %v477, %v470
        %v480 = vmul.f32 %v381, 2.0
        %v481 = vsub.f32 %v479, %v480
        %vm482 = vcmask 31744
        %v484 = vsel %vm482, %v293, 0
        %v487 = vsel %vm482, %v294, 0
        %v490 = vsel %vm482, %v295, 0
        %v493 = vsel %vm482, %v296, 0
        %v496 = vsel %vm482, %v297, 0
        %498 = vmatprep.subr.mxu0 0.0
        %499 = vmatpush1.xpose.msra.mxu0 %v487
        %500 = vmatprep.subr.mxu0 0.0
        %501 = vmatpush1.xpose.msra.mxu0 %v490
        %502 = vmatprep.subr.mxu0 0.0
        %503 = vmatpush1.xpose.msra.mxu0 %v493
        %504 = vmatprep.subr.mxu0 0.0
        %505 = vmatpush1.xpose.msra.mxu0 %v496
        %506 = vmatprep.subr.mxu0 0.0
        %507 = vmatpush1.xpose.msra.mxu0 0.0
        %508 = vmatprep.subr.mxu0 0.0
        %509 = vmatpush1.xpose.msra.mxu0 0.0
        %510 = vmatprep.subr.mxu0 0.0
        %511 = vmatpush1.xpose.msra.mxu0 0.0
        %512 = vmatprep.subr.mxu0 0.0
        %513 = vmatpush1.xpose.msra.mxu0 0.0
        %514 = vmatprep.subr.mxu0 0.0
        %515 = vmatpush1.xpose.msra.mxu0 0.0
        %516 = vmatprep.subr.mxu0 0.0
        %517 = vmatpush1.xpose.msra.mxu0 0.0
        %518 = vmatprep.subr.mxu0 0.0
        %519 = vmatpush1.xpose.msra.mxu0 0.0
        %520 = vmatprep.subr.mxu0 0.0
        %521 = vmatpush1.xpose.msra.mxu0 0.0
        %522 = vmatprep.subr.mxu0 0.0
        %523 = vmatpush1.xpose.msra.mxu0 0.0
        %524 = vmatprep.subr.mxu0 0.0
        %525 = vmatpush1.xpose.msra.mxu0 0.0
        %526 = vmatprep.subr.mxu0 0.0
        %527 = vmatpush1.xpose.msra.mxu0 0.0
        %528 = vmatprep.subr.mxu0 0.0
        %529 = vmatpush1.xpose.msra.mxu0 0.0
        %530 = vmatprep.subr.mxu0 0.0
        %531 = vmatpush1.xpose.msra.mxu0 0.0
        %532 = vmatprep.subr.mxu0 0.0
        %533 = vmatpush1.xpose.msra.mxu0 0.0
        %534 = vmatprep.subr.mxu0 0.0
        %535 = vmatpush1.xpose.msra.mxu0 0.0
        %536 = vmatprep.subr.mxu0 0.0
        %537 = vmatpush1.xpose.msra.mxu0 0.0
        %538 = vmatprep.subr.mxu0 0.0
        %539 = vmatpush1.xpose.msra.mxu0 0.0
        %540 = vmatprep.subr.mxu0 0.0
        %541 = vmatpush1.xpose.msra.mxu0 0.0
        %542 = vmatprep.subr.mxu0 0.0
        %543 = vmatpush1.xpose.msra.mxu0 0.0
        %544 = vmatprep.subr.mxu0 0.0
        %545 = vmatpush1.xpose.msra.mxu0 0.0
        %546 = vmatprep.subr.mxu0 0.0
        %547 = vmatpush1.xpose.msra.mxu0 0.0
        %548 = vmatprep.subr.mxu0 0.0
        %549 = vmatpush1.xpose.msra.mxu0 0.0
        %550 = vmatprep.subr.mxu0 0.0
        %551 = vmatpush1.xpose.msra.mxu0 0.0
        %552 = vmatprep.subr.mxu0 0.0
        %553 = vmatpush1.xpose.msra.mxu0 0.0
        %554 = vmatprep.subr.mxu0 0.0
        %555 = vmatpush1.xpose.msra.mxu0 0.0
        %556 = vmatprep.subr.mxu0 0.0
        %557 = vmatpush1.xpose.msra.mxu0 0.0
        %558 = vmatprep.subr.mxu0 0.0
        %559 = vmatpush1.xpose.msra.mxu0 0.0
        %560 = vmatprep.subr.mxu0 0.0
        %561 = vmatpush1.xpose.msra.mxu0 0.0
        %562 = vmatprep.mubr.f32.mxu0 0.0
        %563 = vmatmul.mubr.f32.gmra.mrb[0].mxu0 %v484
        %v564 = vpop.f32.mrb[0].mxu0
        %v565 = vadd.f32 0.0, %v564
        %v566 = vpop.f32.mrb[0].mxu0
        %567 = vdwg.mxu0
        %vm568 = vcmp.lt.f32.partialorder %v565, 0.5
        %v569 = vsel %vm568, 1, 0
        %v570 = vcvt.s32.f32 %v569
        %v571 = vsub.f32 1.0, %v570
        %v572 = vmul.f32 %v571, 0.5
        %v573 = vmul.f32 %v572, %v481
        %v574 = vmul.f32 %v570, 0.5
        %v575 = vsub.f32 16.0, %v481
        %v576 = vmax.f32 %v575, 0.0
        %v577 = vmul.f32 %v574, %v576
        %v578 = vadd.f32 %v573, %v577
        %s579 = sadd.s32 %s22, %s23
        %s580 = smul.u32 %s579, 32
        %v581 = vlaneseq
        %v582 = vand.u32 %v581, 127
        %v583 = vstv %s580
        %v584 = vadd.s32 %v583, %v582
        %vm585 = vcmp.lt.s32.totalorder %v584, 32
        %v586 = vsel %vm585, 1, 0
        %vm587 = vcmp.eq.s32.totalorder %v586, 1
        %v588 = vsel %vm587, %v578, 0.0
        %v589 = vld [vmem:[#allocation2] sm:$0x3]
        %v590 = vadd.f32 %v589, %v588
        %vm591 = vcmask 254976
        %592 = vst.msk [vmem:[#allocation2] sm:$0x3] %vm591, %v590
        // Predicated region
        $region41: #{tpu_custom_call.1} parent=35 // pred_check
          %p593 = pneg %p274
        $region42: #{tpu_custom_call.1} parent=35 // pred_check_branch
          %595 = sbr.rel (%p593) target = $region44
        $region43: #{tpu_custom_call.1} parent=35 // pred_region
          %v596 = vld [vmem:[#allocation2] sm:$0x3]
          %v597 = vsel %vm591, %v596, 0.0
          %598 = vadd.xlane.f32.xlu0 %v597
          %v599 = vpop.xlane.xlu0 %598
          %v600 = vrot.slane %v599, 4
          %v601 = vadd.f32 %v599, %v600
          %v602 = vrot.slane %v601, 2
          %v603 = vadd.f32 %v601, %v602
          %v604 = vrot.slane %v603, 1
          %v605 = vadd.f32 %v603, %v604
          %s606 = vtos %v605
          %v607 = vstv %s606
          %608 = vst [vmem:[%s249] sm:$0xff] %v607
        $region44: #{tpu_custom_call.1} parent=35 // pred_fallthru
          _
        %s609 = sand.u32 %s144, 1
        %s610 = scalar_lea.sflag [#allocation5], %s609
        %s611 = sand.u32 %s144, 1
        %s612 = smul.addr %s611, 8
        %s613 = scalar_lea.vmem [#allocation4], %s612
        // Predicated region
        $region45: #{tpu_custom_call.1} parent=35 // pred_check
          %p614 = pneg %p154
        $region46: #{tpu_custom_call.1} parent=35 // pred_check_branch
          %616 = sbr.rel (%p614) target = $region48
        $region47: #{tpu_custom_call.1} parent=35 // pred_region
          %s618 = ssub.s32 128, 128
          %619 = vsyncadd %s610, %s618
          %s620 = smul.addr %s22, 128
          %s621 = scalar_lea.hbm %s4, %s620
          %s623 = sshll.u32 %s613, 4
          %s624 = int_to_ptr.vmem [resolvable:$true] %s623
          %626 = dma.vmem_to_hbm [thread:$0]  %s624, 128, %s621, %s610
        $region48: #{tpu_custom_call.1} parent=35 // pred_fallthru
          _
      $region36: #{tpu_custom_call.1} parent=5 // pred_fallthru
        _
      %p627 = scmp.le.s32.totalorder 2, %s13
      // Predicated region
      $region49: #{tpu_custom_call.1} parent=5 // pred_check
        %p628 = pneg %p627
      $region50: #{tpu_custom_call.1} parent=5 // pred_check_branch
        %630 = sbr.rel (%p628) target = $region52
      $region51: #{tpu_custom_call.1} parent=5 // pred_region
        %s631 = ssub.s32 %s13, 2
        // Predicated region
        $region53: #{tpu_custom_call.1} parent=51 // pred_check
          %p632 = pneg %p160
        $region54: #{tpu_custom_call.1} parent=51 // pred_check_branch
          %634 = sbr.rel (%p632) target = $region56
        $region55: #{tpu_custom_call.1} parent=51 // pred_region
          %s635 = sand.u32 %s145, 1
          %s636 = scalar_lea.sflag [#allocation5], %s635
          %s637 = sand.u32 %s145, 1
          %s638 = smul.addr %s637, 8
          %s639 = scalar_lea.vmem [#allocation4], %s638
          %640 = dma.done %s636, 128
        $region56: #{tpu_custom_call.1} parent=51 // pred_fallthru
          _
      $region52: #{tpu_custom_call.1} parent=5 // pred_fallthru
        _
    $region6: #{tpu_custom_call.1} parent=1 // loop_footer
      %s17 = sadd.s32 1, %s13
    $region7: #{tpu_custom_call.1} parent=1 // loop_footer_branch
      %12 = sbr.rel target = $region3
    $region8: #{tpu_custom_call.1} parent=1 // loop_exit
      _
    %641 = vsyncpa [#allocation5], 1
    %s642 = scalar_lea.sflag [#allocation5], 1
    %643 = vsyncpa %s642, 1

</llo_original>
